<compile_context>
chip_gen: v7x
topology: tpu7x:2x2x1
jax: 0.10.0
libtpu: 0.0.40
codegen_flags: <defaults>
</compile_context>

<pallas_src>
import jax
import jax.numpy as jnp
from jax import lax
from jax.experimental import pallas as pl
from jax.experimental.pallas import tpu as pltpu

# ---- module config (config.hidden_size / intermediate_size) -----------------
HIDDEN = 128                # multiple of 128 -> lane-dense everywhere
INTERMEDIATE = 4 * HIDDEN   # BERT convention (= 512)
LN_EPS = 1e-12


def bert_output_kernel(x_ref, res_ref, w_ref, b_ref, gamma_ref, beta_ref, out_ref):
    """One row-tile: dense -> dropout(eval) -> residual add -> BERTLayerNorm."""
    # --- dense: (TM, I) @ (I, H), bf16 operands on the MXU, f32 accumulation ---
    x = x_ref[...].astype(jnp.bfloat16)                 # in-VMEM cast, cheap VPU pass
    h = jnp.dot(x, w_ref[...], preferred_element_type=jnp.float32)

    # --- dropout: eval mode -> identity ---
    # TODO(synk): training-mode dropout (pltpu.prng_seed + prng_random_bits mask)
    #             is not implemented; eval mode is exact.

    # --- bias + residual add (f32) ---
    y = h + b_ref[...] + res_ref[...]                   # (TM, HIDDEN)

    # --- BERTLayerNorm: biased variance, eps inside the sqrt ---
    # One-pass variance; gamma folded into the rsqrt scale; rsqrt -> EUP slot.
    u = jnp.mean(y, axis=-1, keepdims=True)
    var = jnp.mean(y * y, axis=-1, keepdims=True) - u * u
    scale = gamma_ref[...] * lax.rsqrt(var + LN_EPS)
    out_ref[...] = ((y - u) * scale + beta_ref[...]).astype(out_ref.dtype)


def bert_output(hidden_states, input_tensor, params, *, tm=None):
    """hidden_states: (B, S, INTERMEDIATE); input_tensor: (B, S, HIDDEN)."""
    B_, S_, I_ = hidden_states.shape
    H_ = input_tensor.shape[-1]
    M_ = B_ * S_
    out_dtype = input_tensor.dtype

    x2d = hidden_states.reshape(M_, I_)                 # flatten (B, S) -> M rows
    r2d = input_tensor.reshape(M_, H_)

    # Row tile: 256 rows keeps the 256-wide v6e/v7x MXU fed (N=HIDDEN=128 already
    # underfills output width) and easily fits v7x's 64 MiB VMEM.  Tiny inputs
    # just round up to a sublane multiple.
    if tm is None:
        tm = 256 if M_ >= 256 else max(8, ((M_ + 7) // 8) * 8)
    grid_m = pl.cdiv(M_, tm)
    m_pad = grid_m * tm
    if m_pad != M_:
        # Padded rows produce (y-u)=0 -> output beta; sliced off below.
        x2d = jnp.pad(x2d, ((0, m_pad - M_), (0, 0)))
        r2d = jnp.pad(r2d, ((0, m_pad - M_), (0, 0)))

    w_t, b, gamma, beta = params["w_t"], params["b"], params["gamma"], params["beta"]

    out_itemsize = jnp.dtype(out_dtype).itemsize
    bytes_accessed = int(
        x2d.size * x2d.dtype.itemsize
        + r2d.size * r2d.dtype.itemsize
        + w_t.size * w_t.dtype.itemsize
        + (b.size + gamma.size + beta.size) * 4
        + m_pad * H_ * out_itemsize)
    cost = pl.CostEstimate(flops=2 * m_pad * I_ * H_,
                           transcendentals=m_pad,
                           bytes_accessed=bytes_accessed)

    # VMEM budget: double-buffered activation/residual/output tiles + resident
    # bf16 weight + params; 2x headroom, capped at v7x physical 64 MiB.
    vmem_need = (2 * tm * I_ * x2d.dtype.itemsize
                 + 2 * tm * H_ * r2d.dtype.itemsize
                 + 2 * tm * H_ * out_itemsize
                 + I_ * H_ * w_t.dtype.itemsize
                 + 3 * H_ * 4)
    vmem_limit = int(min(max(2 * vmem_need, 4 << 20), 64 << 20))

    out2d = pl.pallas_call(
        bert_output_kernel,
        out_shape=jax.ShapeDtypeStruct((m_pad, H_), out_dtype),
        grid_spec=pltpu.PrefetchScalarGridSpec(
            num_scalar_prefetch=0,
            grid=(grid_m,),
            in_specs=[
                pl.BlockSpec((tm, I_), lambda i: (i, 0)),   # activation rows (pipelined)
                pl.BlockSpec((tm, H_), lambda i: (i, 0)),   # residual rows (pipelined)
                pl.BlockSpec((I_, H_), lambda i: (0, 0)),   # bf16 W^T: DMA'd once, resident
                pl.BlockSpec((1, H_), lambda i: (0, 0)),    # bias
                pl.BlockSpec((1, H_), lambda i: (0, 0)),    # gamma
                pl.BlockSpec((1, H_), lambda i: (0, 0)),    # beta
            ],
            out_specs=pl.BlockSpec((tm, H_), lambda i: (i, 0)),
        ),
        compiler_params=pltpu.CompilerParams(
            dimension_semantics=("parallel",),              # shard row tiles over v7x's 2 TCs
            vmem_limit_bytes=vmem_limit),
        cost_estimate=cost,
    )(x2d, r2d, w_t, b, gamma, beta)

    return out2d[:M_].reshape(B_, S_, H_)


def reference(hidden_states, input_tensor, params):
    """Pure-JAX reference matching the PyTorch forward (eval mode), f32 math."""
    w = params["w_t"].astype(jnp.float32)
    h = hidden_states @ w + params["b"]
    y = h + input_tensor
    u = jnp.mean(y, axis=-1, keepdims=True)
    s = jnp.mean((y - u) ** 2, axis=-1, keepdims=True)
    y = (y - u) / jnp.sqrt(s + LN_EPS)
    return params["gamma"] * y + params["beta"]


def init_params(key):
    k_w, k_b = jax.random.split(key)
    scale = 0.02
    # nn.Linear weight is (out, in) = (HIDDEN, INTERMEDIATE); we store its
    # transpose, in bf16 (halves the dominant weight DMA; matmul accumulates f32).
    return {
        "w_t": (scale * jax.random.normal(k_w, (INTERMEDIATE, HIDDEN),
                                          jnp.float32)).astype(jnp.bfloat16),
        "b":     scale * jax.random.normal(k_b, (1, HIDDEN), jnp.float32),
        "gamma": jnp.ones((1, HIDDEN), jnp.float32),
        "beta":  jnp.zeros((1, HIDDEN), jnp.float32),
    }


if __name__ == "__main__":
    key = jax.random.PRNGKey(0)
    k_x, k_r, k_p = jax.random.split(key, 3)

    # Small demo shapes consistent with the module.
    B, S = 2, 8
    hidden_states = jax.random.normal(k_x, (B, S, INTERMEDIATE), jnp.float32)
    input_tensor = jax.random.normal(k_r, (B, S, HIDDEN), jnp.float32)
    params = init_params(k_p)

    out = bert_output(hidden_states, input_tensor, params)
    out = jax.block_until_ready(out)
    ref = reference(hidden_states, input_tensor, params)
    assert out.shape == (B, S, HIDDEN)
    # Tolerance covers the bf16 weight/activation quantization on the MXU
    # (K=512 f32-accumulated); post-LN values are O(1).
    assert jnp.allclose(out, ref, atol=5e-3, rtol=5e-3), "mismatch vs reference (small)"

    # Also exercise the multi-tile + padding path (M=272 -> two 256-row tiles).
    B2, S2 = 2, 136
    hs2 = jax.random.normal(jax.random.PRNGKey(1), (B2, S2, INTERMEDIATE), jnp.float32)
    it2 = jax.random.normal(jax.random.PRNGKey(2), (B2, S2, HIDDEN), jnp.float32)
    out2 = jax.block_until_ready(bert_output(hs2, it2, params))
    ref2 = reference(hs2, it2, params)
    assert jnp.allclose(out2, ref2, atol=5e-3, rtol=5e-3), "mismatch vs reference (tiled)"

    print("KERNEL_OK")
</pallas_src>

<mosaic_0001>
module attributes {stable_mosaic.version = 11 : i64} {
  func.func @bert_output_kernel(%arg0: i32, %arg1: memref<16x512xf32, #tpu.memory_space<vmem>>, %arg2: memref<16x128xf32, #tpu.memory_space<vmem>>, %arg3: memref<512x128xbf16, #tpu.memory_space<vmem>>, %arg4: memref<1x128xf32, #tpu.memory_space<vmem>>, %arg5: memref<1x128xf32, #tpu.memory_space<vmem>>, %arg6: memref<1x128xf32, #tpu.memory_space<vmem>>, %arg7: memref<16x128xf32, #tpu.memory_space<vmem>>) attributes {dimension_semantics = [#tpu.dimension_semantics<parallel>], iteration_bounds = array<i64: 1>, scalar_prefetch = 0 : i64, scratch_operands = 0 : i64, tpu.core_type = #tpu.core_type<tc>, window_params = [{transform_indices = @transform_0, window_bounds = array<i64: 16, 512>}, {transform_indices = @transform_1, window_bounds = array<i64: 16, 128>}, {pipeline_mode = #tpu.pipeline_mode<synchronous>, transform_indices = @transform_2, window_bounds = array<i64: 512, 128>}, {pipeline_mode = #tpu.pipeline_mode<synchronous>, transform_indices = @transform_3, window_bounds = array<i64: 1, 128>}, {pipeline_mode = #tpu.pipeline_mode<synchronous>, transform_indices = @transform_4, window_bounds = array<i64: 1, 128>}, {pipeline_mode = #tpu.pipeline_mode<synchronous>, transform_indices = @transform_5, window_bounds = array<i64: 1, 128>}, {transform_indices = @transform_6, window_bounds = array<i64: 16, 128>}]} {
    %c0 = arith.constant 0 : index
    %c0_0 = arith.constant 0 : index
    %0 = vector.load %arg1[%c0, %c0_0] : memref<16x512xf32, #tpu.memory_space<vmem>>, vector<16x512xf32>
    %1 = arith.truncf %0 : vector<16x512xf32> to vector<16x512xbf16>
    %c0_1 = arith.constant 0 : index
    %c0_2 = arith.constant 0 : index
    %2 = vector.load %arg3[%c0_1, %c0_2] : memref<512x128xbf16, #tpu.memory_space<vmem>>, vector<512x128xbf16>
    %cst = arith.constant dense<0.000000e+00> : vector<16x128xf32>
    %3 = tpu.matmul %1, %2, %cst {dimension_numbers = #tpu.dot_dimension_numbers<[1], [0], [0], [1], [0, 0, 1, 1], [], []>} : vector<16x512xbf16>, vector<512x128xbf16>, vector<16x128xf32> -> vector<16x128xf32>
    %c0_3 = arith.constant 0 : index
    %c0_4 = arith.constant 0 : index
    %4 = vector.load %arg4[%c0_3, %c0_4] : memref<1x128xf32, #tpu.memory_space<vmem>>, vector<1x128xf32>
    %5 = vector.broadcast %4 : vector<1x128xf32> to vector<16x128xf32>
    %6 = arith.addf %3, %5 : vector<16x128xf32>
    %c0_5 = arith.constant 0 : index
    %c0_6 = arith.constant 0 : index
    %7 = vector.load %arg2[%c0_5, %c0_6] : memref<16x128xf32, #tpu.memory_space<vmem>>, vector<16x128xf32>
    %8 = arith.addf %6, %7 : vector<16x128xf32>
    %cst_7 = arith.constant dense<0.000000e+00> : vector<16xf32>
    %9 = vector.multi_reduction <add>, %8, %cst_7 [1] : vector<16x128xf32> to vector<16xf32>
    %10 = vector.shape_cast %9 : vector<16xf32> to vector<16x1xf32>
    %cst_8 = arith.constant 1.280000e+02 : f32
    %11 = vector.broadcast %cst_8 : f32 to vector<16x1xf32>
    %12 = arith.divf %10, %11 : vector<16x1xf32>
    %13 = arith.mulf %8, %8 : vector<16x128xf32>
    %cst_9 = arith.constant dense<0.000000e+00> : vector<16xf32>
    %14 = vector.multi_reduction <add>, %13, %cst_9 [1] : vector<16x128xf32> to vector<16xf32>
    %15 = vector.shape_cast %14 : vector<16xf32> to vector<16x1xf32>
    %cst_10 = arith.constant 1.280000e+02 : f32
    %16 = vector.broadcast %cst_10 : f32 to vector<16x1xf32>
    %17 = arith.divf %15, %16 : vector<16x1xf32>
    %18 = arith.mulf %12, %12 : vector<16x1xf32>
    %19 = arith.subf %17, %18 : vector<16x1xf32>
    %c0_11 = arith.constant 0 : index
    %c0_12 = arith.constant 0 : index
    %20 = vector.load %arg5[%c0_11, %c0_12] : memref<1x128xf32, #tpu.memory_space<vmem>>, vector<1x128xf32>
    %cst_13 = arith.constant 9.99999996E-13 : f32
    %21 = vector.broadcast %cst_13 : f32 to vector<16x1xf32>
    %22 = arith.addf %19, %21 : vector<16x1xf32>
    %23 = math.rsqrt %22 : vector<16x1xf32>
    %24 = vector.broadcast %20 : vector<1x128xf32> to vector<16x128xf32>
    %25 = vector.broadcast %23 : vector<16x1xf32> to vector<16x128xf32>
    %26 = arith.mulf %24, %25 : vector<16x128xf32>
    %27 = vector.broadcast %12 : vector<16x1xf32> to vector<16x128xf32>
    %28 = arith.subf %8, %27 : vector<16x128xf32>
    %29 = arith.mulf %28, %26 : vector<16x128xf32>
    %c0_14 = arith.constant 0 : index
    %c0_15 = arith.constant 0 : index
    %30 = vector.load %arg6[%c0_14, %c0_15] : memref<1x128xf32, #tpu.memory_space<vmem>>, vector<1x128xf32>
    %31 = vector.broadcast %30 : vector<1x128xf32> to vector<16x128xf32>
    %32 = arith.addf %29, %31 : vector<16x128xf32>
    %c0_16 = arith.constant 0 : index
    %c0_17 = arith.constant 0 : index
    %33 = vector.load %arg7[%c0_16, %c0_17] : memref<16x128xf32, #tpu.memory_space<vmem>>, vector<16x128xf32>
    tpu.vector_store %arg7[%c0_16, %c0_17], %32 {strides = array<i32>} : memref<16x128xf32, #tpu.memory_space<vmem>>, vector<16x128xf32>,
    return
  }
  func.func @transform_0(%arg0: i32) -> (i32, i32) {
    %c0_i32 = arith.constant 0 : i32
    %c0_i32_0 = arith.constant 0 : i32
    return %arg0, %c0_i32 : i32, i32
  }
  func.func @transform_1(%arg0: i32) -> (i32, i32) {
    %c0_i32 = arith.constant 0 : i32
    %c0_i32_0 = arith.constant 0 : i32
    return %arg0, %c0_i32 : i32, i32
  }
  func.func @transform_2(%arg0: i32) -> (i32, i32) {
    %c0_i32 = arith.constant 0 : i32
    %c0_i32_0 = arith.constant 0 : i32
    %c0_i32_1 = arith.constant 0 : i32
    return %c0_i32, %c0_i32_0 : i32, i32
  }
  func.func @transform_3(%arg0: i32) -> (i32, i32) {
    %c0_i32 = arith.constant 0 : i32
    %c0_i32_0 = arith.constant 0 : i32
    %c0_i32_1 = arith.constant 0 : i32
    return %c0_i32, %c0_i32_0 : i32, i32
  }
  func.func @transform_4(%arg0: i32) -> (i32, i32) {
    %c0_i32 = arith.constant 0 : i32
    %c0_i32_0 = arith.constant 0 : i32
    %c0_i32_1 = arith.constant 0 : i32
    return %c0_i32, %c0_i32_0 : i32, i32
  }
  func.func @transform_5(%arg0: i32) -> (i32, i32) {
    %c0_i32 = arith.constant 0 : i32
    %c0_i32_0 = arith.constant 0 : i32
    %c0_i32_1 = arith.constant 0 : i32
    return %c0_i32, %c0_i32_0 : i32, i32
  }
  func.func @transform_6(%arg0: i32) -> (i32, i32) {
    %c0_i32 = arith.constant 0 : i32
    %c0_i32_0 = arith.constant 0 : i32
    return %arg0, %c0_i32 : i32, i32
  }
}

</mosaic_0001>

<llo_original>
// kernel: tpu_custom_call.1
$region0: #{tpu_custom_call.1}
  #allocation0 [shape = 'u32[]', space=smem, size = 0x4, offset = 0x4, fixed_abs, tag = 'smem constant byte address 0x4 - core index']
  #allocation1 [shape = 'u32[144,128]{1,0:T(1,128)}', space=vmem, size = 0x12000, scoped, tag = 'internal scratch']
  %s0 = inlined_call_operand.hbm [shape: f32[16,512], index: 0, kind: input, shape index: {}]
  %s1 = inlined_call_operand.hbm [shape: f32[16,128], index: 1, kind: input, shape index: {}]
  %s2 = inlined_call_operand.hbm [shape: bf16[512,128], index: 2, kind: input, shape index: {}]
  %s3 = inlined_call_operand.vmem [shape: f32[1,128], index: 3, kind: input, shape index: {}]
  %s4 = inlined_call_operand.vmem [shape: f32[1,128], index: 4, kind: input, shape index: {}]
  %s5 = inlined_call_operand.vmem [shape: f32[1,128], index: 5, kind: input, shape index: {}]
  %s6 = inlined_call_operand.hbm [shape: f32[16,128], index: 6, kind: output, shape index: {}]
  %s7 = sld [smem:[#allocation0]]
  $region46: #{tpu_custom_call.1} parent=0
    _
  %s9 = ssub.s32 1, %s7
  %s10 = scalar_select 0, %s9, %s7
  $region1: #{tpu_custom_call.1} parent=0
    #allocation2 [shape = 'u8[32768]{0}', space=vmem, size = 0x8000, scoped, tag = 'input window, operand 0, single buffered']
    #allocation3 [shape = 's32[1]{0}', space=sflag, size = 0x4, scoped, tag = 'scoped memory for tpu_custom_call.1']
    #allocation4 [shape = 's32[1]{0}', space=sflag, size = 0x4, scoped, tag = 'scoped memory for tpu_custom_call.1']
    #allocation5 [shape = 'u8[8192]{0}', space=vmem, size = 0x2000, scoped, tag = 'input window, operand 1, single buffered']
    #allocation6 [shape = 's32[1]{0}', space=sflag, size = 0x4, scoped, tag = 'scoped memory for tpu_custom_call.1']
    #allocation7 [shape = 'u8[131072]{0}', space=vmem, size = 0x20000, scoped, tag = 'input window, operand 2, single buffered']
    #allocation8 [shape = 'u8[8192]{0}', space=vmem, size = 0x2000, scoped, tag = 'output window, operand 0, single buffered']
    %11 = vsyncpa [#allocation3], 0
    %12 = vsyncpa [#allocation6], 0
    %13 = vsyncpa [#allocation4], 0
    // Predicated region
    $region2: #{tpu_custom_call.1} parent=1 // pred_check
      _
    $region3: #{tpu_custom_call.1} parent=1 // pred_check_branch
      %15 = sbr.rel (0) target = $region5
    $region4: #{tpu_custom_call.1} parent=1 // pred_region
      %s17 = ssub.s32 1024, 1024
      %18 = vsyncadd [#allocation3], %s17
      %s19 = sshll.u32 [#allocation2], 4
      %s20 = int_to_ptr.vmem [resolvable:$true] %s19
      %25 = dma.hbm_to_vmem [thread:$0]  %s0, 1024, %s20, [#allocation3], 512, 512, 32
    $region5: #{tpu_custom_call.1} parent=1 // pred_fallthru
      _
    // Predicated region
    $region6: #{tpu_custom_call.1} parent=1 // pred_check
      _
    $region7: #{tpu_custom_call.1} parent=1 // pred_check_branch
      %27 = sbr.rel (0) target = $region9
    $region8: #{tpu_custom_call.1} parent=1 // pred_region
      %s29 = ssub.s32 256, 256
      %30 = vsyncadd [#allocation6], %s29
      %s31 = sshll.u32 [#allocation5], 4
      %s32 = int_to_ptr.vmem [resolvable:$true] %s31
      %37 = dma.hbm_to_vmem [thread:$0]  %s1, 256, %s32, [#allocation6], 128, 128, 8
    $region9: #{tpu_custom_call.1} parent=1 // pred_fallthru
      _
    // Predicated region
    $region10: #{tpu_custom_call.1} parent=1 // pred_check
      _
    $region11: #{tpu_custom_call.1} parent=1 // pred_check_branch
      %39 = sbr.rel (0) target = $region13
    $region12: #{tpu_custom_call.1} parent=1 // pred_region
      %s41 = ssub.s32 4096, 4096
      %42 = vsyncadd [#allocation6], %s41
      %s43 = sshll.u32 [#allocation7], 4
      %s44 = int_to_ptr.vmem [resolvable:$true] %s43
      %49 = dma.hbm_to_vmem [thread:$0]  %s2, 4096, %s44, [#allocation6], 64, 64, 4
    $region13: #{tpu_custom_call.1} parent=1 // pred_fallthru
      _
    // Predicated region
    $region14: #{tpu_custom_call.1} parent=1 // pred_check
      _
    $region15: #{tpu_custom_call.1} parent=1 // pred_check_branch
      %51 = sbr.rel (0) target = $region17
    $region16: #{tpu_custom_call.1} parent=1 // pred_region
      _
    $region17: #{tpu_custom_call.1} parent=1 // pred_fallthru
      _
    // Predicated region
    $region18: #{tpu_custom_call.1} parent=1 // pred_check
      _
    $region19: #{tpu_custom_call.1} parent=1 // pred_check_branch
      %53 = sbr.rel (0) target = $region21
    $region20: #{tpu_custom_call.1} parent=1 // pred_region
      _
    $region21: #{tpu_custom_call.1} parent=1 // pred_fallthru
      _
    // Predicated region
    $region22: #{tpu_custom_call.1} parent=1 // pred_check
      _
    $region23: #{tpu_custom_call.1} parent=1 // pred_check_branch
      %55 = sbr.rel (0) target = $region25
    $region24: #{tpu_custom_call.1} parent=1 // pred_region
      _
    $region25: #{tpu_custom_call.1} parent=1 // pred_fallthru
      _
    // Predicated region
    $region26: #{tpu_custom_call.1} parent=1 // pred_check
      _
    $region27: #{tpu_custom_call.1} parent=1 // pred_check_branch
      %57 = sbr.rel (0) target = $region29
    $region28: #{tpu_custom_call.1} parent=1 // pred_region
      %58 = dma.done [#allocation3], 1024
    $region29: #{tpu_custom_call.1} parent=1 // pred_fallthru
      _
    // Predicated region
    $region30: #{tpu_custom_call.1} parent=1 // pred_check
      _
    $region31: #{tpu_custom_call.1} parent=1 // pred_check_branch
      %60 = sbr.rel (0) target = $region33
    $region32: #{tpu_custom_call.1} parent=1 // pred_region
      %61 = dma.done [#allocation6], 256
    $region33: #{tpu_custom_call.1} parent=1 // pred_fallthru
      _
    // Predicated region
    $region34: #{tpu_custom_call.1} parent=1 // pred_check
      _
    $region35: #{tpu_custom_call.1} parent=1 // pred_check_branch
      %63 = sbr.rel (0) target = $region37
    $region36: #{tpu_custom_call.1} parent=1 // pred_region
      %64 = dma.done [#allocation6], 4096
    $region37: #{tpu_custom_call.1} parent=1 // pred_fallthru
      _
    %v66 = vld [vmem:[#allocation2] sm:$0xff]
    %v67 = vld [vmem:[#allocation2 + $0x8] sm:$0xff]
    %v68 = vld [vmem:[#allocation2 + $0x10] sm:$0xff]
    %v69 = vld [vmem:[#allocation2 + $0x18] sm:$0xff]
    %v70 = vld [vmem:[#allocation2 + $0x20] sm:$0xff]
    %v71 = vld [vmem:[#allocation2 + $0x28] sm:$0xff]
    %v72 = vld [vmem:[#allocation2 + $0x30] sm:$0xff]
    %v73 = vld [vmem:[#allocation2 + $0x38] sm:$0xff]
    %v74 = vpack.c.bf16 %v70, %v66
    %v75 = vpack.c.bf16 %v71, %v67
    %v76 = vpack.c.bf16 %v72, %v68
    %v77 = vpack.c.bf16 %v73, %v69
    %v78 = vld [vmem:[#allocation7] sm:$0xf]
    %v79 = vld [vmem:[#allocation7 + $0x4] sm:$0xf]
    %v80 = vld [vmem:[#allocation7 + $0x8] sm:$0xf]
    %v81 = vld [vmem:[#allocation7 + $0xc] sm:$0xf]
    %v82 = vld [vmem:[#allocation7 + $0x10] sm:$0xf]
    %v83 = vld [vmem:[#allocation7 + $0x14] sm:$0xf]
    %v84 = vld [vmem:[#allocation7 + $0x18] sm:$0xf]
    %v85 = vld [vmem:[#allocation7 + $0x1c] sm:$0xf]
    %v86 = vld [vmem:[#allocation7 + $0x20] sm:$0xf]
    %v87 = vld [vmem:[#allocation7 + $0x24] sm:$0xf]
    %v88 = vld [vmem:[#allocation7 + $0x28] sm:$0xf]
    %v89 = vld [vmem:[#allocation7 + $0x2c] sm:$0xf]
    %v90 = vld [vmem:[#allocation7 + $0x30] sm:$0xf]
    %v91 = vld [vmem:[#allocation7 + $0x34] sm:$0xf]
    %v92 = vld [vmem:[#allocation7 + $0x38] sm:$0xf]
    %v93 = vld [vmem:[#allocation7 + $0x3c] sm:$0xf]
    %v94 = vld [vmem:[#allocation7 + $0x40] sm:$0xf]
    %v95 = vld [vmem:[#allocation7 + $0x44] sm:$0xf]
    %v96 = vld [vmem:[#allocation7 + $0x48] sm:$0xf]
    %v97 = vld [vmem:[#allocation7 + $0x4c] sm:$0xf]
    %v98 = vld [vmem:[#allocation7 + $0x50] sm:$0xf]
    %v99 = vld [vmem:[#allocation7 + $0x54] sm:$0xf]
    %v100 = vld [vmem:[#allocation7 + $0x58] sm:$0xf]
    %v101 = vld [vmem:[#allocation7 + $0x5c] sm:$0xf]
    %v102 = vld [vmem:[#allocation7 + $0x60] sm:$0xf]
    %v103 = vld [vmem:[#allocation7 + $0x64] sm:$0xf]
    %v104 = vld [vmem:[#allocation7 + $0x68] sm:$0xf]
    %v105 = vld [vmem:[#allocation7 + $0x6c] sm:$0xf]
    %v106 = vld [vmem:[#allocation7 + $0x70] sm:$0xf]
    %v107 = vld [vmem:[#allocation7 + $0x74] sm:$0xf]
    %v108 = vld [vmem:[#allocation7 + $0x78] sm:$0xf]
    %v109 = vld [vmem:[#allocation7 + $0x7c] sm:$0xf]
    %v110 = vld [vmem:[#allocation7 + $0x80] sm:$0xf]
    %v111 = vld [vmem:[#allocation7 + $0x84] sm:$0xf]
    %v112 = vld [vmem:[#allocation7 + $0x88] sm:$0xf]
    %v113 = vld [vmem:[#allocation7 + $0x8c] sm:$0xf]
    %v114 = vld [vmem:[#allocation7 + $0x90] sm:$0xf]
    %v115 = vld [vmem:[#allocation7 + $0x94] sm:$0xf]
    %v116 = vld [vmem:[#allocation7 + $0x98] sm:$0xf]
    %v117 = vld [vmem:[#allocation7 + $0x9c] sm:$0xf]
    %v118 = vld [vmem:[#allocation7 + $0xa0] sm:$0xf]
    %v119 = vld [vmem:[#allocation7 + $0xa4] sm:$0xf]
    %v120 = vld [vmem:[#allocation7 + $0xa8] sm:$0xf]
    %v121 = vld [vmem:[#allocation7 + $0xac] sm:$0xf]
    %v122 = vld [vmem:[#allocation7 + $0xb0] sm:$0xf]
    %v123 = vld [vmem:[#allocation7 + $0xb4] sm:$0xf]
    %v124 = vld [vmem:[#allocation7 + $0xb8] sm:$0xf]
    %v125 = vld [vmem:[#allocation7 + $0xbc] sm:$0xf]
    %v126 = vld [vmem:[#allocation7 + $0xc0] sm:$0xf]
    %v127 = vld [vmem:[#allocation7 + $0xc4] sm:$0xf]
    %v128 = vld [vmem:[#allocation7 + $0xc8] sm:$0xf]
    %v129 = vld [vmem:[#allocation7 + $0xcc] sm:$0xf]
    %v130 = vld [vmem:[#allocation7 + $0xd0] sm:$0xf]
    %v131 = vld [vmem:[#allocation7 + $0xd4] sm:$0xf]
    %v132 = vld [vmem:[#allocation7 + $0xd8] sm:$0xf]
    %v133 = vld [vmem:[#allocation7 + $0xdc] sm:$0xf]
    %v134 = vld [vmem:[#allocation7 + $0xe0] sm:$0xf]
    %v135 = vld [vmem:[#allocation7 + $0xe4] sm:$0xf]
    %v136 = vld [vmem:[#allocation7 + $0xe8] sm:$0xf]
    %v137 = vld [vmem:[#allocation7 + $0xec] sm:$0xf]
    %v138 = vld [vmem:[#allocation7 + $0xf0] sm:$0xf]
    %v139 = vld [vmem:[#allocation7 + $0xf4] sm:$0xf]
    %v140 = vld [vmem:[#allocation7 + $0xf8] sm:$0xf]
    %v141 = vld [vmem:[#allocation7 + $0xfc] sm:$0xf]
    %v142 = vld [vmem:[%s3] sm:$0x1]
    %v144 = vlaneseq
    %v145 = vshrl.u32 %v144, 7
    %v146 = vsub.s32 0, %v145
    %v147 = vrot.slane %v142, %v146
    %v213 = vunpack.c.l.b16 %v78
    %v214 = vunpack.c.l.b16 %v79
    %v215 = vunpack.c.l.b16 %v80
    %v216 = vunpack.c.l.b16 %v81
    %v217 = vunpack.c.l.b16 %v82
    %v218 = vunpack.c.l.b16 %v83
    %v219 = vunpack.c.l.b16 %v84
    %v220 = vunpack.c.l.b16 %v85
    %v221 = vunpack.c.l.b16 %v86
    %v222 = vunpack.c.l.b16 %v87
    %v223 = vunpack.c.l.b16 %v88
    %v224 = vunpack.c.l.b16 %v89
    %v225 = vunpack.c.l.b16 %v90
    %v226 = vunpack.c.l.b16 %v91
    %v227 = vunpack.c.l.b16 %v92
    %v228 = vunpack.c.l.b16 %v93
    %v229 = vunpack.c.l.b16 %v94
    %v230 = vunpack.c.l.b16 %v95
    %v231 = vunpack.c.l.b16 %v96
    %v232 = vunpack.c.l.b16 %v97
    %v233 = vunpack.c.l.b16 %v98
    %v234 = vunpack.c.l.b16 %v99
    %v235 = vunpack.c.l.b16 %v100
    %v236 = vunpack.c.l.b16 %v101
    %v237 = vunpack.c.l.b16 %v102
    %v238 = vunpack.c.l.b16 %v103
    %v239 = vunpack.c.l.b16 %v104
    %v240 = vunpack.c.l.b16 %v105
    %v241 = vunpack.c.l.b16 %v106
    %v242 = vunpack.c.l.b16 %v107
    %v243 = vunpack.c.l.b16 %v108
    %v244 = vunpack.c.l.b16 %v109
    %v245 = vunpack.c.l.b16 %v110
    %v246 = vunpack.c.l.b16 %v111
    %v247 = vunpack.c.l.b16 %v112
    %v248 = vunpack.c.l.b16 %v113
    %v249 = vunpack.c.l.b16 %v114
    %v250 = vunpack.c.l.b16 %v115
    %v251 = vunpack.c.l.b16 %v116
    %v252 = vunpack.c.l.b16 %v117
    %v253 = vunpack.c.l.b16 %v118
    %v254 = vunpack.c.l.b16 %v119
    %v255 = vunpack.c.l.b16 %v120
    %v256 = vunpack.c.l.b16 %v121
    %v257 = vunpack.c.l.b16 %v122
    %v258 = vunpack.c.l.b16 %v123
    %v259 = vunpack.c.l.b16 %v124
    %v260 = vunpack.c.l.b16 %v125
    %v261 = vunpack.c.l.b16 %v126
    %v262 = vunpack.c.l.b16 %v127
    %v263 = vunpack.c.l.b16 %v128
    %v264 = vunpack.c.l.b16 %v129
    %v265 = vunpack.c.l.b16 %v130
    %v266 = vunpack.c.l.b16 %v131
    %v267 = vunpack.c.l.b16 %v132
    %v268 = vunpack.c.l.b16 %v133
    %v269 = vunpack.c.l.b16 %v134
    %v270 = vunpack.c.l.b16 %v135
    %v271 = vunpack.c.l.b16 %v136
    %v272 = vunpack.c.l.b16 %v137
    %v273 = vunpack.c.l.b16 %v138
    %v274 = vunpack.c.l.b16 %v139
    %v275 = vunpack.c.l.b16 %v140
    %v276 = vunpack.c.l.b16 %v141
    %v277 = vpack.c.b16 %v214, %v213
    %v278 = vpack.c.b16 %v216, %v215
    %v279 = vpack.c.b16 %v218, %v217
    %v280 = vpack.c.b16 %v220, %v219
    %v281 = vpack.c.b16 %v222, %v221
    %v282 = vpack.c.b16 %v224, %v223
    %v283 = vpack.c.b16 %v226, %v225
    %v284 = vpack.c.b16 %v228, %v227
    %v285 = vpack.c.b16 %v230, %v229
    %v286 = vpack.c.b16 %v232, %v231
    %v287 = vpack.c.b16 %v234, %v233
    %v288 = vpack.c.b16 %v236, %v235
    %v289 = vpack.c.b16 %v238, %v237
    %v290 = vpack.c.b16 %v240, %v239
    %v291 = vpack.c.b16 %v242, %v241
    %v292 = vpack.c.b16 %v244, %v243
    %v293 = vpack.c.b16 %v246, %v245
    %v294 = vpack.c.b16 %v248, %v247
    %v295 = vpack.c.b16 %v250, %v249
    %v296 = vpack.c.b16 %v252, %v251
    %v297 = vpack.c.b16 %v254, %v253
    %v298 = vpack.c.b16 %v256, %v255
    %v299 = vpack.c.b16 %v258, %v257
    %v300 = vpack.c.b16 %v260, %v259
    %v301 = vpack.c.b16 %v262, %v261
    %v302 = vpack.c.b16 %v264, %v263
    %v303 = vpack.c.b16 %v266, %v265
    %v304 = vpack.c.b16 %v268, %v267
    %v305 = vpack.c.b16 %v270, %v269
    %v306 = vpack.c.b16 %v272, %v271
    %v307 = vpack.c.b16 %v274, %v273
    %v308 = vpack.c.b16 %v276, %v275
    %341 = vmatprep.subr.bf16.mxu0 0
    %342 = vmatpush1.bf16.msra.mxu0 %v277
    %343 = vmatprep.subr.bf16.mxu0 0
    %344 = vmatpush1.bf16.msra.mxu0 %v278
    %345 = vmatprep.subr.bf16.mxu0 0
    %346 = vmatpush1.bf16.msra.mxu0 %v279
    %347 = vmatprep.subr.bf16.mxu0 0
    %348 = vmatpush1.bf16.msra.mxu0 %v280
    %349 = vmatprep.subr.bf16.mxu0 0
    %350 = vmatpush1.bf16.msra.mxu0 %v281
    %351 = vmatprep.subr.bf16.mxu0 0
    %352 = vmatpush1.bf16.msra.mxu0 %v282
    %353 = vmatprep.subr.bf16.mxu0 0
    %354 = vmatpush1.bf16.msra.mxu0 %v283
    %355 = vmatprep.subr.bf16.mxu0 0
    %356 = vmatpush1.bf16.msra.mxu0 %v284
    %357 = vmatprep.subr.bf16.mxu0 0
    %358 = vmatpush1.bf16.msra.mxu0 %v285
    %359 = vmatprep.subr.bf16.mxu0 0
    %360 = vmatpush1.bf16.msra.mxu0 %v286
    %361 = vmatprep.subr.bf16.mxu0 0
    %362 = vmatpush1.bf16.msra.mxu0 %v287
    %363 = vmatprep.subr.bf16.mxu0 0
    %364 = vmatpush1.bf16.msra.mxu0 %v288
    %365 = vmatprep.subr.bf16.mxu0 0
    %366 = vmatpush1.bf16.msra.mxu0 %v289
    %367 = vmatprep.subr.bf16.mxu0 0
    %368 = vmatpush1.bf16.msra.mxu0 %v290
    %369 = vmatprep.subr.bf16.mxu0 0
    %370 = vmatpush1.bf16.msra.mxu0 %v291
    %371 = vmatprep.subr.bf16.mxu0 0
    %372 = vmatpush1.bf16.msra.mxu0 %v292
    %373 = vmatprep.mubr.bf16.mxu0 %v75
    %374 = vmatmul.mubr.bf16.gmra.mrb[0].mxu0 %v74
    %v375 = vpop.f32.mrb[0].mxu0
    %v376 = vadd.f32 %v147, %v375
    %v377 = vpop.f32.mrb[0].mxu0
    %v378 = vpop.f32.mrb[0].mxu0
    %v379 = vadd.f32 %v147, %v378
    %v380 = vpop.f32.mrb[0].mxu0
    %381 = vdwg.mxu0
    %382 = vmatprep.subr.bf16.mxu0 0
    %383 = vmatpush1.bf16.msra.mxu0 %v293
    %384 = vmatprep.subr.bf16.mxu0 0
    %385 = vmatpush1.bf16.msra.mxu0 %v294
    %386 = vmatprep.subr.bf16.mxu0 0
    %387 = vmatpush1.bf16.msra.mxu0 %v295
    %388 = vmatprep.subr.bf16.mxu0 0
    %389 = vmatpush1.bf16.msra.mxu0 %v296
    %390 = vmatprep.subr.bf16.mxu0 0
    %391 = vmatpush1.bf16.msra.mxu0 %v297
    %392 = vmatprep.subr.bf16.mxu0 0
    %393 = vmatpush1.bf16.msra.mxu0 %v298
    %394 = vmatprep.subr.bf16.mxu0 0
    %395 = vmatpush1.bf16.msra.mxu0 %v299
    %396 = vmatprep.subr.bf16.mxu0 0
    %397 = vmatpush1.bf16.msra.mxu0 %v300
    %398 = vmatprep.subr.bf16.mxu0 0
    %399 = vmatpush1.bf16.msra.mxu0 %v301
    %400 = vmatprep.subr.bf16.mxu0 0
    %401 = vmatpush1.bf16.msra.mxu0 %v302
    %402 = vmatprep.subr.bf16.mxu0 0
    %403 = vmatpush1.bf16.msra.mxu0 %v303
    %404 = vmatprep.subr.bf16.mxu0 0
    %405 = vmatpush1.bf16.msra.mxu0 %v304
    %406 = vmatprep.subr.bf16.mxu0 0
    %407 = vmatpush1.bf16.msra.mxu0 %v305
    %408 = vmatprep.subr.bf16.mxu0 0
    %409 = vmatpush1.bf16.msra.mxu0 %v306
    %410 = vmatprep.subr.bf16.mxu0 0
    %411 = vmatpush1.bf16.msra.mxu0 %v307
    %412 = vmatprep.subr.bf16.mxu0 0
    %413 = vmatpush1.bf16.msra.mxu0 %v308
    %414 = vmatprep.mubr.bf16.mxu0 %v77
    %415 = vmatmul.mubr.bf16.gmra.mrb[0].mxu0 %v76
    %v416 = vpop.f32.mrb[0].mxu0
    %v417 = vadd.f32 %v376, %v416
    %v418 = vpop.f32.mrb[0].mxu0
    %v419 = vpop.f32.mrb[0].mxu0
    %v420 = vadd.f32 %v379, %v419
    %v421 = vpop.f32.mrb[0].mxu0
    %422 = vdwg.mxu0
    %v423 = vld [vmem:[#allocation5] sm:$0xff]
    %v424 = vld [vmem:[#allocation5 + $0x8] sm:$0xff]
    %v425 = vadd.f32 %v417, %v423
    %v426 = vadd.f32 %v420, %v424
    %427 = vadd.xlane.f32.xlu0 %v425
    %v428 = vpop.xlane.xlu0 %427
    %429 = vadd.xlane.f32.xlu0 %v426
    %v430 = vpop.xlane.xlu0 %429
    %v431 = vrcp.pop 128.0
    %v432 = vmul.f32 %v428, %v431
    %v433 = vmul.f32 %v430, %v431
    %v434 = vmul.f32 %v425, %v425
    %v435 = vmul.f32 %v426, %v426
    %436 = vadd.xlane.f32.xlu0 %v434
    %v437 = vpop.xlane.xlu0 %436
    %438 = vadd.xlane.f32.xlu0 %v435
    %v439 = vpop.xlane.xlu0 %438
    %v440 = vmul.f32 %v437, %v431
    %v441 = vmul.f32 %v439, %v431
    %v442 = vmul.f32 %v432, %v432
    %v443 = vmul.f32 %v433, %v433
    %v444 = vsub.f32 %v440, %v442
    %v445 = vsub.f32 %v441, %v443
    %v446 = vld [vmem:[%s4] sm:$0x1]
    %v447 = vadd.f32 %v444, 1e-12
    %v448 = vadd.f32 %v445, 1e-12
    %v449 = vrsqrt.pop %v447
    %v450 = vrsqrt.pop %v448
    %v452 = vlaneseq
    %v453 = vshrl.u32 %v452, 7
    %v454 = vsub.s32 0, %v453
    %v455 = vrot.slane %v446, %v454
    %v457 = vmul.f32 %v455, %v449
    %v458 = vmul.f32 %v455, %v450
    %v459 = vsub.f32 %v425, %v432
    %v460 = vsub.f32 %v426, %v433
    %v461 = vmul.f32 %v459, %v457
    %v462 = vmul.f32 %v460, %v458
    %v463 = vld [vmem:[%s5] sm:$0x1]
    %v465 = vlaneseq
    %v466 = vshrl.u32 %v465, 7
    %v467 = vsub.s32 0, %v466
    %v468 = vrot.slane %v463, %v467
    %v470 = vadd.f32 %v461, %v468
    %v471 = vadd.f32 %v462, %v468
    %472 = vst [vmem:[#allocation8] sm:$0xff] %v470
    %473 = vst [vmem:[#allocation8 + $0x8] sm:$0xff] %v471
    // Predicated region
    $region38: #{tpu_custom_call.1} parent=1 // pred_check
      _
    $region39: #{tpu_custom_call.1} parent=1 // pred_check_branch
      %475 = sbr.rel (0) target = $region41
    $region40: #{tpu_custom_call.1} parent=1 // pred_region
      %s477 = ssub.s32 256, 256
      %478 = vsyncadd [#allocation4], %s477
      %s479 = sshll.u32 [#allocation8], 4
      %s480 = int_to_ptr.vmem [resolvable:$true] %s479
      %485 = dma.vmem_to_hbm [thread:$0]  %s480, 256, %s6, [#allocation4], 128, 128, 8
    $region41: #{tpu_custom_call.1} parent=1 // pred_fallthru
      _
    // Predicated region
    $region42: #{tpu_custom_call.1} parent=1 // pred_check
      _
    $region43: #{tpu_custom_call.1} parent=1 // pred_check_branch
      %487 = sbr.rel (0) target = $region45
    $region44: #{tpu_custom_call.1} parent=1 // pred_region
      %488 = dma.done [#allocation4], 256
    $region45: #{tpu_custom_call.1} parent=1 // pred_fallthru
      _
    %489 = vsyncpa [#allocation3], 1
    %490 = vsyncpa [#allocation6], 1
    %491 = vsyncpa [#allocation4], 1

</llo_original>
